<compile_context>
chip_gen: v7x
topology: tpu7x:2x2x1
jax: 0.10.0
libtpu: 0.0.40
codegen_flags: <defaults>
</compile_context>

<pallas_src>
import functools

import jax
import jax.numpy as jnp
from jax.experimental import pallas as pl
from jax.experimental.pallas import tpu as pltpu


def _round_up(x, m):
    return ((x + m - 1) // m) * m


def _actor_kernel(action_dims, x_ref, w1_ref, b1_ref, w2_ref, b2_ref,
                  w3_ref, b3_ref, out_ref):
    """One batch tile: 3 matmuls + ReLUs + fused per-group softmax.

    The logits / output width is padded to a multiple of 128 by the wrapper
    (zero-padded w3/b3 columns), so every softmax vreg is lane-dense and the
    final store is a single unmasked, lane-dense vst. Padded columns belong to
    no group mask; the wrapper slices them off.
    """
    mm_dtype = w1_ref.dtype  # bf16 iff the wrapper cast MXU operands (v6e/v7x opt-in)

    x = x_ref[...]
    if x.dtype != mm_dtype:
        x = x.astype(mm_dtype)

    # Layer 1: Linear + ReLU (MXU matmul, f32 accumulate; bias/ReLU in f32).
    h1 = jnp.dot(x, w1_ref[...], preferred_element_type=jnp.float32) + b1_ref[...]
    h1 = jnp.maximum(h1, 0.0)
    if mm_dtype != jnp.float32:
        h1 = h1.astype(mm_dtype)

    # Layer 2: Linear + ReLU.
    h2 = jnp.dot(h1, w2_ref[...], preferred_element_type=jnp.float32) + b2_ref[...]
    h2 = jnp.maximum(h2, 0.0)
    if mm_dtype != jnp.float32:
        h2 = h2.astype(mm_dtype)

    # Layer 3: Linear -> logits (f32), N padded to a multiple of 128 lanes.
    logits = jnp.dot(h2, w3_ref[...], preferred_element_type=jnp.float32) + b3_ref[...]

    # Fused per-group softmax. Segment boundaries are static Python ints ->
    # static lane masks over the REAL columns only. Padded lanes (logits are
    # exactly 0 from the zero-padded w3/b3) are in no mask and get sliced off
    # by the wrapper.
    width = logits.shape[-1]
    col = jax.lax.broadcasted_iota(jnp.int32, (1, width), 1)
    masks = []
    off = 0
    for n in action_dims:
        masks.append((col >= off) & (col < off + n))
        off += n

    # Per-group max broadcast back to full width via VPU selects (no slices).
    m_full = jnp.zeros_like(logits)
    for mask in masks:
        g_max = jnp.max(jnp.where(mask, logits, -jnp.inf), axis=-1, keepdims=True)
        m_full = jnp.where(mask, g_max, m_full)

    e = jnp.exp(logits - m_full)  # one EUP exp pass over the full (lane-dense) width

    # Per-group sum broadcast back to full width.
    s_full = jnp.ones_like(logits)
    for mask in masks:
        g_sum = jnp.sum(jnp.where(mask, e, 0.0), axis=-1, keepdims=True)
        s_full = jnp.where(mask, g_sum, s_full)

    probs = e / s_full  # exact division: matches torch.softmax normalization

    # Single lane-dense store of the whole (tile_b, 128k) output block.
    out_ref[...] = probs.astype(out_ref.dtype)


def actor_forward(state, params, action_dims, *, block_b=2048, matmul_dtype=None):
    """state: [B, state_dim] f32. Returns concatenated per-group softmax probs
    [B, sum(action_dims)] f32.

    matmul_dtype=jnp.bfloat16 casts the MXU operands (weights and activations
    entering each dot, i.e. also the post-ReLU h1/h2); accumulation, bias-add,
    ReLU and softmax remain f32. Leave it None (pure f32) on v5e.
    """
    w1, b1, w2, b2, w3, b3 = params
    if matmul_dtype is not None and matmul_dtype != jnp.float32:
        w1 = w1.astype(matmul_dtype)
        w2 = w2.astype(matmul_dtype)
        w3 = w3.astype(matmul_dtype)

    B, state_dim = state.shape
    hidden = w1.shape[1]
    action_dims = tuple(int(a) for a in action_dims)
    total = sum(action_dims)

    # Lane-dense output head: zero-pad w3/b3 columns to a multiple of 128.
    # Padded logits are exactly 0, excluded from every group mask, and sliced
    # off after the pallas_call.
    total_padded = _round_up(total, 128)
    if total_padded != total:
        w3 = jnp.pad(w3, ((0, 0), (0, total_padded - total)))
        b3 = jnp.pad(b3, ((0, 0), (0, total_padded - total)))

    # Batch tile: multiple of 128 (clean MXU M-blocks), capped at block_b.
    tile_b = min(_round_up(block_b, 128), _round_up(max(B, 1), 128))
    # If the batch spans more than one 128-row tile but would fit in a single
    # grid step, split it so the "parallel" axis shards across v7x's 2 TCs.
    # (Harmless on v5e/v6e: one extra ~0.35us grid step.)
    if _round_up(B, 128) > 128 and _round_up(B, tile_b) // tile_b < 2:
        tile_b = _round_up(-(-B // 2), 128)
    padded_b = _round_up(B, tile_b)
    if padded_b != B:
        state = jnp.pad(state, ((0, padded_b - B), (0, 0)))
    # NOTE: state_dim (x's last dim) is deliberately NOT padded to 128 in HBM;
    # the (tile_b, state_dim) block is already a contiguous DMA and padding it
    # would only multiply input read traffic.

    kernel = functools.partial(_actor_kernel, action_dims)

    out = pl.pallas_call(
        kernel,
        out_shape=jax.ShapeDtypeStruct((padded_b, total_padded), jnp.float32),
        grid=(padded_b // tile_b,),
        in_specs=[
            pl.BlockSpec((tile_b, state_dim), lambda i: (i, 0)),     # x: batch-tiled
            # Weights/biases: constant index_map -> fetched once, stay resident
            # across grid steps (no re-DMA).
            pl.BlockSpec((state_dim, hidden), lambda i: (0, 0)),     # w1
            pl.BlockSpec((1, hidden), lambda i: (0, 0)),             # b1
            pl.BlockSpec((hidden, hidden), lambda i: (0, 0)),        # w2
            pl.BlockSpec((1, hidden), lambda i: (0, 0)),             # b2
            pl.BlockSpec((hidden, total_padded), lambda i: (0, 0)),  # w3 (padded N)
            pl.BlockSpec((1, total_padded), lambda i: (0, 0)),       # b3 (padded N)
        ],
        out_specs=pl.BlockSpec((tile_b, total_padded), lambda i: (i, 0)),
        compiler_params=pltpu.CompilerParams(
            dimension_semantics=("parallel",),   # shards across TCs on v7x
            vmem_limit_bytes=32 * 1024 * 1024,   # insurance vs v5e's 16 MiB default
        ),
    )(state, w1, b1, w2, b2, w3, b3)

    return out[:B, :total]


def init_actor_params(key, state_dim, action_dims, hidden=128):
    """Deterministic synthetic init matching nn.Linear shapes (stored transposed)."""
    total = int(sum(action_dims))
    k1, k2, k3 = jax.random.split(key, 3)

    def lin(k, fan_in, fan_out):
        bound = 1.0 / jnp.sqrt(fan_in)
        kw, kb = jax.random.split(k)
        w = jax.random.uniform(kw, (fan_in, fan_out), jnp.float32, -bound, bound)
        b = jax.random.uniform(kb, (1, fan_out), jnp.float32, -bound, bound)
        return w, b

    w1, b1 = lin(k1, state_dim, hidden)
    w2, b2 = lin(k2, hidden, hidden)
    w3, b3 = lin(k3, hidden, total)
    return (w1, b1, w2, b2, w3, b3)


def actor_ref(state, params, action_dims):
    """Pure-JAX f32 reference (matches the PyTorch module)."""
    w1, b1, w2, b2, w3, b3 = params
    h = jnp.maximum(state @ w1 + b1, 0.0)
    h = jnp.maximum(h @ w2 + b2, 0.0)
    logits = h @ w3 + b3
    outs, off = [], 0
    for n in action_dims:
        outs.append(jax.nn.softmax(logits[:, off:off + n], axis=-1))
        off += n
    return jnp.concatenate(outs, axis=-1)


if __name__ == "__main__":
    key = jax.random.PRNGKey(0)
    k_state, k_params, k_state2 = jax.random.split(key, 3)

    batch = 8
    state_dim = 32
    action_dims = (3, 4, 5)  # e.g. MultiDiscrete([3, 4, 5]) -> action_space.nvec
    total = sum(action_dims)

    params = init_actor_params(k_params, state_dim, action_dims)
    state = jax.random.normal(k_state, (batch, state_dim), dtype=jnp.float32)
    expected = actor_ref(state, params, action_dims)

    # 1) f32 path (exact PyTorch semantics), single grid step, padded head.
    probs = jax.block_until_ready(actor_forward(state, params, action_dims))
    assert probs.shape == (batch, total)
    assert jnp.allclose(probs, expected, atol=2e-3, rtol=2e-3), "f32 path mismatch vs reference"

    # 2) bf16 MXU-operand path (v6e/v7x opt-in; elementwise stays f32).
    probs_bf16 = jax.block_until_ready(
        actor_forward(state, params, action_dims, matmul_dtype=jnp.bfloat16))
    assert jnp.allclose(probs_bf16, expected, atol=5e-2, rtol=5e-2), "bf16 path mismatch vs reference"

    # 3) batch larger than one 128-row tile: default block_b -> grid forced to
    #    >= 2 steps (v7x 2-TC sharding) + batch padding.
    batch2 = 300
    state2 = jax.random.normal(k_state2, (batch2, state_dim), dtype=jnp.float32)
    expected2 = actor_ref(state2, params, action_dims)
    probs2 = jax.block_until_ready(actor_forward(state2, params, action_dims))
    assert probs2.shape == (batch2, total)
    assert jnp.allclose(probs2, expected2, atol=2e-3, rtol=2e-3), "split-grid path mismatch"

    # 4) explicit small tile -> multi-step pipelined grid (3 steps of 128 rows).
    probs3 = jax.block_until_ready(
        actor_forward(state2, params, action_dims, block_b=128))
    assert probs3.shape == (batch2, total)
    assert jnp.allclose(probs3, expected2, atol=2e-3, rtol=2e-3), "tiled path mismatch"

    # Each softmax group sums to 1 (exact division in-kernel).
    off = 0
    for n in action_dims:
        assert jnp.allclose(probs[:, off:off + n].sum(-1), 1.0, atol=1e-4)
        assert jnp.allclose(probs2[:, off:off + n].sum(-1), 1.0, atol=1e-4)
        assert jnp.allclose(probs3[:, off:off + n].sum(-1), 1.0, atol=1e-4)
        off += n

    print("KERNEL_OK")
</pallas_src>

<mosaic_0001>
module attributes {stable_mosaic.version = 11 : i64} {
  func.func @_actor_kernel(%arg0: i32, %arg1: memref<128x32xf32, #tpu.memory_space<vmem>>, %arg2: memref<32x128xf32, #tpu.memory_space<vmem>>, %arg3: memref<1x128xf32, #tpu.memory_space<vmem>>, %arg4: memref<128x128xf32, #tpu.memory_space<vmem>>, %arg5: memref<1x128xf32, #tpu.memory_space<vmem>>, %arg6: memref<128x128xf32, #tpu.memory_space<vmem>>, %arg7: memref<1x128xf32, #tpu.memory_space<vmem>>, %arg8: memref<128x128xf32, #tpu.memory_space<vmem>>) attributes {dimension_semantics = [#tpu.dimension_semantics<parallel>], iteration_bounds = array<i64: 1>, scalar_prefetch = 0 : i64, scratch_operands = 0 : i64, tpu.core_type = #tpu.core_type<tc>, window_params = [{transform_indices = @transform_0, window_bounds = array<i64: 128, 32>}, {pipeline_mode = #tpu.pipeline_mode<synchronous>, transform_indices = @transform_1, window_bounds = array<i64: 32, 128>}, {pipeline_mode = #tpu.pipeline_mode<synchronous>, transform_indices = @transform_2, window_bounds = array<i64: 1, 128>}, {pipeline_mode = #tpu.pipeline_mode<synchronous>, transform_indices = @transform_3, window_bounds = array<i64: 128, 128>}, {pipeline_mode = #tpu.pipeline_mode<synchronous>, transform_indices = @transform_4, window_bounds = array<i64: 1, 128>}, {pipeline_mode = #tpu.pipeline_mode<synchronous>, transform_indices = @transform_5, window_bounds = array<i64: 128, 128>}, {pipeline_mode = #tpu.pipeline_mode<synchronous>, transform_indices = @transform_6, window_bounds = array<i64: 1, 128>}, {transform_indices = @transform_7, window_bounds = array<i64: 128, 128>}]} {
    %c0 = arith.constant 0 : index
    %c0_0 = arith.constant 0 : index
    %0 = vector.load %arg1[%c0, %c0_0] : memref<128x32xf32, #tpu.memory_space<vmem>>, vector<128x32xf32>
    %c0_1 = arith.constant 0 : index
    %c0_2 = arith.constant 0 : index
    %1 = vector.load %arg2[%c0_1, %c0_2] : memref<32x128xf32, #tpu.memory_space<vmem>>, vector<32x128xf32>
    %cst = arith.constant dense<0.000000e+00> : vector<128x128xf32>
    %2 = tpu.matmul %0, %1, %cst {dimension_numbers = #tpu.dot_dimension_numbers<[1], [0], [0], [1], [0, 0, 1, 1], [], []>} : vector<128x32xf32>, vector<32x128xf32>, vector<128x128xf32> -> vector<128x128xf32>
    %c0_3 = arith.constant 0 : index
    %c0_4 = arith.constant 0 : index
    %3 = vector.load %arg3[%c0_3, %c0_4] : memref<1x128xf32, #tpu.memory_space<vmem>>, vector<1x128xf32>
    %4 = vector.broadcast %3 : vector<1x128xf32> to vector<128x128xf32>
    %5 = arith.addf %2, %4 : vector<128x128xf32>
    %cst_5 = arith.constant 0.000000e+00 : f32
    %6 = vector.broadcast %cst_5 : f32 to vector<128x128xf32>
    %7 = arith.maximumf %5, %6 : vector<128x128xf32>
    %c0_6 = arith.constant 0 : index
    %c0_7 = arith.constant 0 : index
    %8 = vector.load %arg4[%c0_6, %c0_7] : memref<128x128xf32, #tpu.memory_space<vmem>>, vector<128x128xf32>
    %cst_8 = arith.constant dense<0.000000e+00> : vector<128x128xf32>
    %9 = tpu.matmul %7, %8, %cst_8 {dimension_numbers = #tpu.dot_dimension_numbers<[1], [0], [0], [1], [0, 0, 1, 1], [], []>} : vector<128x128xf32>, vector<128x128xf32>, vector<128x128xf32> -> vector<128x128xf32>
    %c0_9 = arith.constant 0 : index
    %c0_10 = arith.constant 0 : index
    %10 = vector.load %arg5[%c0_9, %c0_10] : memref<1x128xf32, #tpu.memory_space<vmem>>, vector<1x128xf32>
    %11 = vector.broadcast %10 : vector<1x128xf32> to vector<128x128xf32>
    %12 = arith.addf %9, %11 : vector<128x128xf32>
    %cst_11 = arith.constant 0.000000e+00 : f32
    %13 = vector.broadcast %cst_11 : f32 to vector<128x128xf32>
    %14 = arith.maximumf %12, %13 : vector<128x128xf32>
    %c0_12 = arith.constant 0 : index
    %c0_13 = arith.constant 0 : index
    %15 = vector.load %arg6[%c0_12, %c0_13] : memref<128x128xf32, #tpu.memory_space<vmem>>, vector<128x128xf32>
    %cst_14 = arith.constant dense<0.000000e+00> : vector<128x128xf32>
    %16 = tpu.matmul %14, %15, %cst_14 {dimension_numbers = #tpu.dot_dimension_numbers<[1], [0], [0], [1], [0, 0, 1, 1], [], []>} : vector<128x128xf32>, vector<128x128xf32>, vector<128x128xf32> -> vector<128x128xf32>
    %c0_15 = arith.constant 0 : index
    %c0_16 = arith.constant 0 : index
    %17 = vector.load %arg7[%c0_15, %c0_16] : memref<1x128xf32, #tpu.memory_space<vmem>>, vector<1x128xf32>
    %18 = vector.broadcast %17 : vector<1x128xf32> to vector<128x128xf32>
    %19 = arith.addf %16, %18 : vector<128x128xf32>
    %20 = tpu.iota {dimensions = array<i32: 1>} : vector<1x128xi32>
    %c0_i32 = arith.constant 0 : i32
    %21 = vector.broadcast %c0_i32 : i32 to vector<1x128xi32>
    %22 = arith.cmpi sge, %20, %21 : vector<1x128xi32>
    %c3_i32 = arith.constant 3 : i32
    %23 = vector.broadcast %c3_i32 : i32 to vector<1x128xi32>
    %24 = arith.cmpi slt, %20, %23 : vector<1x128xi32>
    %25 = arith.andi %22, %24 : vector<1x128xi1>
    %c3_i32_17 = arith.constant 3 : i32
    %26 = vector.broadcast %c3_i32_17 : i32 to vector<1x128xi32>
    %27 = arith.cmpi sge, %20, %26 : vector<1x128xi32>
    %c7_i32 = arith.constant 7 : i32
    %28 = vector.broadcast %c7_i32 : i32 to vector<1x128xi32>
    %29 = arith.cmpi slt, %20, %28 : vector<1x128xi32>
    %30 = arith.andi %27, %29 : vector<1x128xi1>
    %c7_i32_18 = arith.constant 7 : i32
    %31 = vector.broadcast %c7_i32_18 : i32 to vector<1x128xi32>
    %32 = arith.cmpi sge, %20, %31 : vector<1x128xi32>
    %c12_i32 = arith.constant 12 : i32
    %33 = vector.broadcast %c12_i32 : i32 to vector<1x128xi32>
    %34 = arith.cmpi slt, %20, %33 : vector<1x128xi32>
    %35 = arith.andi %32, %34 : vector<1x128xi1>
    %cst_19 = arith.constant 0.000000e+00 : f32
    %36 = vector.broadcast %cst_19 : f32 to vector<128x128xf32>
    %cst_20 = arith.constant 0xFF800000 : f32
    %37 = vector.shape_cast %25 : vector<1x128xi1> to vector<1x128xi1>
    %38 = vector.broadcast %37 : vector<1x128xi1> to vector<128x128xi1>
    %39 = vector.broadcast %cst_20 : f32 to vector<128x128xf32>
    %40 = arith.select %38, %19, %39 : vector<128x128xi1>, vector<128x128xf32>
    %cst_21 = arith.constant dense<0xFF800000> : vector<128xf32>
    %41 = vector.multi_reduction <maximumf>, %40, %cst_21 [1] : vector<128x128xf32> to vector<128xf32>
    %42 = vector.shape_cast %41 : vector<128xf32> to vector<128x1xf32>
    %43 = vector.shape_cast %25 : vector<1x128xi1> to vector<1x128xi1>
    %44 = vector.broadcast %43 : vector<1x128xi1> to vector<128x128xi1>
    %45 = vector.shape_cast %42 : vector<128x1xf32> to vector<128x1xf32>
    %46 = vector.broadcast %45 : vector<128x1xf32> to vector<128x128xf32>
    %47 = arith.select %44, %46, %36 : vector<128x128xi1>, vector<128x128xf32>
    %cst_22 = arith.constant 0xFF800000 : f32
    %48 = vector.shape_cast %30 : vector<1x128xi1> to vector<1x128xi1>
    %49 = vector.broadcast %48 : vector<1x128xi1> to vector<128x128xi1>
    %50 = vector.broadcast %cst_22 : f32 to vector<128x128xf32>
    %51 = arith.select %49, %19, %50 : vector<128x128xi1>, vector<128x128xf32>
    %cst_23 = arith.constant dense<0xFF800000> : vector<128xf32>
    %52 = vector.multi_reduction <maximumf>, %51, %cst_23 [1] : vector<128x128xf32> to vector<128xf32>
    %53 = vector.shape_cast %52 : vector<128xf32> to vector<128x1xf32>
    %54 = vector.shape_cast %30 : vector<1x128xi1> to vector<1x128xi1>
    %55 = vector.broadcast %54 : vector<1x128xi1> to vector<128x128xi1>
    %56 = vector.shape_cast %53 : vector<128x1xf32> to vector<128x1xf32>
    %57 = vector.broadcast %56 : vector<128x1xf32> to vector<128x128xf32>
    %58 = arith.select %55, %57, %47 : vector<128x128xi1>, vector<128x128xf32>
    %cst_24 = arith.constant 0xFF800000 : f32
    %59 = vector.shape_cast %35 : vector<1x128xi1> to vector<1x128xi1>
    %60 = vector.broadcast %59 : vector<1x128xi1> to vector<128x128xi1>
    %61 = vector.broadcast %cst_24 : f32 to vector<128x128xf32>
    %62 = arith.select %60, %19, %61 : vector<128x128xi1>, vector<128x128xf32>
    %cst_25 = arith.constant dense<0xFF800000> : vector<128xf32>
    %63 = vector.multi_reduction <maximumf>, %62, %cst_25 [1] : vector<128x128xf32> to vector<128xf32>
    %64 = vector.shape_cast %63 : vector<128xf32> to vector<128x1xf32>
    %65 = vector.shape_cast %35 : vector<1x128xi1> to vector<1x128xi1>
    %66 = vector.broadcast %65 : vector<1x128xi1> to vector<128x128xi1>
    %67 = vector.shape_cast %64 : vector<128x1xf32> to vector<128x1xf32>
    %68 = vector.broadcast %67 : vector<128x1xf32> to vector<128x128xf32>
    %69 = arith.select %66, %68, %58 : vector<128x128xi1>, vector<128x128xf32>
    %70 = arith.subf %19, %69 : vector<128x128xf32>
    %71 = math.exp %70 : vector<128x128xf32>
    %cst_26 = arith.constant 1.000000e+00 : f32
    %72 = vector.broadcast %cst_26 : f32 to vector<128x128xf32>
    %cst_27 = arith.constant 0.000000e+00 : f32
    %73 = vector.shape_cast %25 : vector<1x128xi1> to vector<1x128xi1>
    %74 = vector.broadcast %73 : vector<1x128xi1> to vector<128x128xi1>
    %75 = vector.broadcast %cst_27 : f32 to vector<128x128xf32>
    %76 = arith.select %74, %71, %75 : vector<128x128xi1>, vector<128x128xf32>
    %cst_28 = arith.constant dense<0.000000e+00> : vector<128xf32>
    %77 = vector.multi_reduction <add>, %76, %cst_28 [1] : vector<128x128xf32> to vector<128xf32>
    %78 = vector.shape_cast %77 : vector<128xf32> to vector<128x1xf32>
    %79 = vector.shape_cast %25 : vector<1x128xi1> to vector<1x128xi1>
    %80 = vector.broadcast %79 : vector<1x128xi1> to vector<128x128xi1>
    %81 = vector.shape_cast %78 : vector<128x1xf32> to vector<128x1xf32>
    %82 = vector.broadcast %81 : vector<128x1xf32> to vector<128x128xf32>
    %83 = arith.select %80, %82, %72 : vector<128x128xi1>, vector<128x128xf32>
    %cst_29 = arith.constant 0.000000e+00 : f32
    %84 = vector.shape_cast %30 : vector<1x128xi1> to vector<1x128xi1>
    %85 = vector.broadcast %84 : vector<1x128xi1> to vector<128x128xi1>
    %86 = vector.broadcast %cst_29 : f32 to vector<128x128xf32>
    %87 = arith.select %85, %71, %86 : vector<128x128xi1>, vector<128x128xf32>
    %cst_30 = arith.constant dense<0.000000e+00> : vector<128xf32>
    %88 = vector.multi_reduction <add>, %87, %cst_30 [1] : vector<128x128xf32> to vector<128xf32>
    %89 = vector.shape_cast %88 : vector<128xf32> to vector<128x1xf32>
    %90 = vector.shape_cast %30 : vector<1x128xi1> to vector<1x128xi1>
    %91 = vector.broadcast %90 : vector<1x128xi1> to vector<128x128xi1>
    %92 = vector.shape_cast %89 : vector<128x1xf32> to vector<128x1xf32>
    %93 = vector.broadcast %92 : vector<128x1xf32> to vector<128x128xf32>
    %94 = arith.select %91, %93, %83 : vector<128x128xi1>, vector<128x128xf32>
    %cst_31 = arith.constant 0.000000e+00 : f32
    %95 = vector.shape_cast %35 : vector<1x128xi1> to vector<1x128xi1>
    %96 = vector.broadcast %95 : vector<1x128xi1> to vector<128x128xi1>
    %97 = vector.broadcast %cst_31 : f32 to vector<128x128xf32>
    %98 = arith.select %96, %71, %97 : vector<128x128xi1>, vector<128x128xf32>
    %cst_32 = arith.constant dense<0.000000e+00> : vector<128xf32>
    %99 = vector.multi_reduction <add>, %98, %cst_32 [1] : vector<128x128xf32> to vector<128xf32>
    %100 = vector.shape_cast %99 : vector<128xf32> to vector<128x1xf32>
    %101 = vector.shape_cast %35 : vector<1x128xi1> to vector<1x128xi1>
    %102 = vector.broadcast %101 : vector<1x128xi1> to vector<128x128xi1>
    %103 = vector.shape_cast %100 : vector<128x1xf32> to vector<128x1xf32>
    %104 = vector.broadcast %103 : vector<128x1xf32> to vector<128x128xf32>
    %105 = arith.select %102, %104, %94 : vector<128x128xi1>, vector<128x128xf32>
    %106 = arith.divf %71, %105 : vector<128x128xf32>
    %c0_33 = arith.constant 0 : index
    %c0_34 = arith.constant 0 : index
    %107 = vector.load %arg8[%c0_33, %c0_34] : memref<128x128xf32, #tpu.memory_space<vmem>>, vector<128x128xf32>
    tpu.vector_store %arg8[%c0_33, %c0_34], %106 {strides = array<i32>} : memref<128x128xf32, #tpu.memory_space<vmem>>, vector<128x128xf32>,
    return
  }
  func.func @transform_0(%arg0: i32) -> (i32, i32) {
    %c0_i32 = arith.constant 0 : i32
    %c0_i32_0 = arith.constant 0 : i32
    return %arg0, %c0_i32 : i32, i32
  }
  func.func @transform_1(%arg0: i32) -> (i32, i32) {
    %c0_i32 = arith.constant 0 : i32
    %c0_i32_0 = arith.constant 0 : i32
    %c0_i32_1 = arith.constant 0 : i32
    return %c0_i32, %c0_i32_0 : i32, i32
  }
  func.func @transform_2(%arg0: i32) -> (i32, i32) {
    %c0_i32 = arith.constant 0 : i32
    %c0_i32_0 = arith.constant 0 : i32
    %c0_i32_1 = arith.constant 0 : i32
    return %c0_i32, %c0_i32_0 : i32, i32
  }
  func.func @transform_3(%arg0: i32) -> (i32, i32) {
    %c0_i32 = arith.constant 0 : i32
    %c0_i32_0 = arith.constant 0 : i32
    %c0_i32_1 = arith.constant 0 : i32
    return %c0_i32, %c0_i32_0 : i32, i32
  }
  func.func @transform_4(%arg0: i32) -> (i32, i32) {
    %c0_i32 = arith.constant 0 : i32
    %c0_i32_0 = arith.constant 0 : i32
    %c0_i32_1 = arith.constant 0 : i32
    return %c0_i32, %c0_i32_0 : i32, i32
  }
  func.func @transform_5(%arg0: i32) -> (i32, i32) {
    %c0_i32 = arith.constant 0 : i32
    %c0_i32_0 = arith.constant 0 : i32
    %c0_i32_1 = arith.constant 0 : i32
    return %c0_i32, %c0_i32_0 : i32, i32
  }
  func.func @transform_6(%arg0: i32) -> (i32, i32) {
    %c0_i32 = arith.constant 0 : i32
    %c0_i32_0 = arith.constant 0 : i32
    %c0_i32_1 = arith.constant 0 : i32
    return %c0_i32, %c0_i32_0 : i32, i32
  }
  func.func @transform_7(%arg0: i32) -> (i32, i32) {
    %c0_i32 = arith.constant 0 : i32
    %c0_i32_0 = arith.constant 0 : i32
    return %arg0, %c0_i32 : i32, i32
  }
}

</mosaic_0001>

<llo_original>
// kernel: tpu_custom_call.1
$region0: #{tpu_custom_call.1}
  #allocation0 [shape = 'u32[]', space=smem, size = 0x4, offset = 0x4, fixed_abs, tag = 'smem constant byte address 0x4 - core index']
  #allocation1 [shape = 'u32[144,128]{1,0:T(1,128)}', space=vmem, size = 0x12000, scoped, tag = 'internal scratch']
  %s0 = inlined_call_operand.vmem [shape: f32[128,32], index: 0, kind: input, shape index: {}]
  %s1 = inlined_call_operand.vmem [shape: f32[32,128], index: 1, kind: input, shape index: {}]
  %s2 = inlined_call_operand.vmem [shape: f32[1,128], index: 2, kind: input, shape index: {}]
  %s3 = inlined_call_operand.vmem [shape: f32[128,128], index: 3, kind: input, shape index: {}]
  %s4 = inlined_call_operand.vmem [shape: f32[1,128], index: 4, kind: input, shape index: {}]
  %s5 = inlined_call_operand.hbm [shape: f32[128,128], index: 5, kind: input, shape index: {}]
  %s6 = inlined_call_operand.vmem [shape: f32[1,128], index: 6, kind: input, shape index: {}]
  %s7 = inlined_call_operand.hbm [shape: f32[128,128], index: 7, kind: output, shape index: {}]
  %s8 = sld [smem:[#allocation0]]
  $region42: #{tpu_custom_call.1} parent=0
    _
  %s10 = ssub.s32 1, %s8
  %s11 = scalar_select 0, %s10, %s8
  $region1: #{tpu_custom_call.1} parent=0
    #allocation2 [shape = 'u8[65536]{0}', space=vmem, size = 0x10000, scoped, tag = 'input window, operand 5, single buffered']
    #allocation3 [shape = 's32[1]{0}', space=sflag, size = 0x4, scoped, tag = 'scoped memory for tpu_custom_call.1']
    #allocation4 [shape = 's32[1]{0}', space=sflag, size = 0x4, scoped, tag = 'scoped memory for tpu_custom_call.1']
    #allocation5 [shape = 'u8[65536]{0}', space=vmem, size = 0x10000, scoped, tag = 'output window, operand 0, single buffered']
    %12 = vsyncpa [#allocation3], 0
    %13 = vsyncpa [#allocation4], 0
    // Predicated region
    $region2: #{tpu_custom_call.1} parent=1 // pred_check
      _
    $region3: #{tpu_custom_call.1} parent=1 // pred_check_branch
      %15 = sbr.rel (0) target = $region5
    $region4: #{tpu_custom_call.1} parent=1 // pred_region
      _
    $region5: #{tpu_custom_call.1} parent=1 // pred_fallthru
      _
    // Predicated region
    $region6: #{tpu_custom_call.1} parent=1 // pred_check
      _
    $region7: #{tpu_custom_call.1} parent=1 // pred_check_branch
      %17 = sbr.rel (0) target = $region9
    $region8: #{tpu_custom_call.1} parent=1 // pred_region
      _
    $region9: #{tpu_custom_call.1} parent=1 // pred_fallthru
      _
    // Predicated region
    $region10: #{tpu_custom_call.1} parent=1 // pred_check
      _
    $region11: #{tpu_custom_call.1} parent=1 // pred_check_branch
      %19 = sbr.rel (0) target = $region13
    $region12: #{tpu_custom_call.1} parent=1 // pred_region
      _
    $region13: #{tpu_custom_call.1} parent=1 // pred_fallthru
      _
    // Predicated region
    $region14: #{tpu_custom_call.1} parent=1 // pred_check
      _
    $region15: #{tpu_custom_call.1} parent=1 // pred_check_branch
      %21 = sbr.rel (0) target = $region17
    $region16: #{tpu_custom_call.1} parent=1 // pred_region
      _
    $region17: #{tpu_custom_call.1} parent=1 // pred_fallthru
      _
    // Predicated region
    $region18: #{tpu_custom_call.1} parent=1 // pred_check
      _
    $region19: #{tpu_custom_call.1} parent=1 // pred_check_branch
      %23 = sbr.rel (0) target = $region21
    $region20: #{tpu_custom_call.1} parent=1 // pred_region
      _
    $region21: #{tpu_custom_call.1} parent=1 // pred_fallthru
      _
    // Predicated region
    $region22: #{tpu_custom_call.1} parent=1 // pred_check
      _
    $region23: #{tpu_custom_call.1} parent=1 // pred_check_branch
      %25 = sbr.rel (0) target = $region25
    $region24: #{tpu_custom_call.1} parent=1 // pred_region
      %s27 = ssub.s32 2048, 2048
      %28 = vsyncadd [#allocation3], %s27
      %s29 = sshll.u32 [#allocation2], 4
      %s30 = int_to_ptr.vmem [resolvable:$true] %s29
      %35 = dma.hbm_to_vmem [thread:$0]  %s5, 2048, %s30, [#allocation3], 128, 128, 8
    $region25: #{tpu_custom_call.1} parent=1 // pred_fallthru
      _
    // Predicated region
    $region26: #{tpu_custom_call.1} parent=1 // pred_check
      _
    $region27: #{tpu_custom_call.1} parent=1 // pred_check_branch
      %37 = sbr.rel (0) target = $region29
    $region28: #{tpu_custom_call.1} parent=1 // pred_region
      _
    $region29: #{tpu_custom_call.1} parent=1 // pred_fallthru
      _
    // Predicated region
    $region30: #{tpu_custom_call.1} parent=1 // pred_check
      _
    $region31: #{tpu_custom_call.1} parent=1 // pred_check_branch
      %39 = sbr.rel (0) target = $region33
    $region32: #{tpu_custom_call.1} parent=1 // pred_region
      %40 = dma.done [#allocation3], 2048
    $region33: #{tpu_custom_call.1} parent=1 // pred_fallthru
      _
    %v41 = vld [vmem:[%s0] sm:$0xff]
    %v42 = vld [vmem:[%s0 + $0x8] sm:$0xff]
    %v43 = vld [vmem:[%s0 + $0x10] sm:$0xff]
    %v44 = vld [vmem:[%s0 + $0x18] sm:$0xff]
    %v45 = vld [vmem:[%s0 + $0x20] sm:$0xff]
    %v46 = vld [vmem:[%s0 + $0x28] sm:$0xff]
    %v47 = vld [vmem:[%s0 + $0x30] sm:$0xff]
    %v48 = vld [vmem:[%s0 + $0x38] sm:$0xff]
    %v49 = vld [vmem:[%s0 + $0x40] sm:$0xff]
    %v50 = vld [vmem:[%s0 + $0x48] sm:$0xff]
    %v51 = vld [vmem:[%s0 + $0x50] sm:$0xff]
    %v52 = vld [vmem:[%s0 + $0x58] sm:$0xff]
    %v53 = vld [vmem:[%s0 + $0x60] sm:$0xff]
    %v54 = vld [vmem:[%s0 + $0x68] sm:$0xff]
    %v55 = vld [vmem:[%s0 + $0x70] sm:$0xff]
    %v56 = vld [vmem:[%s0 + $0x78] sm:$0xff]
    %v57 = vld [vmem:[%s1] sm:$0xff]
    %v58 = vld [vmem:[%s1 + $0x8] sm:$0xff]
    %v59 = vld [vmem:[%s1 + $0x10] sm:$0xff]
    %v60 = vld [vmem:[%s1 + $0x18] sm:$0xff]
    %v61 = vld [vmem:[%s2] sm:$0x1]
    %v63 = vlaneseq
    %v64 = vshrl.u32 %v63, 7
    %v65 = vsub.s32 0, %v64
    %v66 = vrot.slane %v61, %v65
    %vm68 = vcmask 261120
    %v70 = vsel %vm68, %v41, 0
    %v73 = vsel %vm68, %v42, 0
    %v76 = vsel %vm68, %v43, 0
    %v79 = vsel %vm68, %v44, 0
    %v82 = vsel %vm68, %v45, 0
    %v85 = vsel %vm68, %v46, 0
    %v88 = vsel %vm68, %v47, 0
    %v91 = vsel %vm68, %v48, 0
    %v94 = vsel %vm68, %v49, 0
    %v97 = vsel %vm68, %v50, 0
    %v100 = vsel %vm68, %v51, 0
    %v103 = vsel %vm68, %v52, 0
    %v106 = vsel %vm68, %v53, 0
    %v109 = vsel %vm68, %v54, 0
    %v112 = vsel %vm68, %v55, 0
    %v115 = vsel %vm68, %v56, 0
    %117 = vmatprep.subr.mxu0 0.0
    %118 = vmatpush1.msra.mxu0 %v57
    %119 = vmatprep.subr.mxu0 0.0
    %120 = vmatpush1.msra.mxu0 %v58
    %121 = vmatprep.subr.mxu0 0.0
    %122 = vmatpush1.msra.mxu0 %v59
    %123 = vmatprep.subr.mxu0 0.0
    %124 = vmatpush1.msra.mxu0 %v60
    %125 = vmatprep.subr.mxu0 0.0
    %126 = vmatpush1.msra.mxu0 0.0
    %127 = vmatprep.subr.mxu0 0.0
    %128 = vmatpush1.msra.mxu0 0.0
    %129 = vmatprep.subr.mxu0 0.0
    %130 = vmatpush1.msra.mxu0 0.0
    %131 = vmatprep.subr.mxu0 0.0
    %132 = vmatpush1.msra.mxu0 0.0
    %133 = vmatprep.subr.mxu0 0.0
    %134 = vmatpush1.msra.mxu0 0.0
    %135 = vmatprep.subr.mxu0 0.0
    %136 = vmatpush1.msra.mxu0 0.0
    %137 = vmatprep.subr.mxu0 0.0
    %138 = vmatpush1.msra.mxu0 0.0
    %139 = vmatprep.subr.mxu0 0.0
    %140 = vmatpush1.msra.mxu0 0.0
    %141 = vmatprep.subr.mxu0 0.0
    %142 = vmatpush1.msra.mxu0 0.0
    %143 = vmatprep.subr.mxu0 0.0
    %144 = vmatpush1.msra.mxu0 0.0
    %145 = vmatprep.subr.mxu0 0.0
    %146 = vmatpush1.msra.mxu0 0.0
    %147 = vmatprep.subr.mxu0 0.0
    %148 = vmatpush1.msra.mxu0 0.0
    %149 = vmatprep.subr.mxu0 0.0
    %150 = vmatpush1.msra.mxu0 0.0
    %151 = vmatprep.subr.mxu0 0.0
    %152 = vmatpush1.msra.mxu0 0.0
    %153 = vmatprep.subr.mxu0 0.0
    %154 = vmatpush1.msra.mxu0 0.0
    %155 = vmatprep.subr.mxu0 0.0
    %156 = vmatpush1.msra.mxu0 0.0
    %157 = vmatprep.subr.mxu0 0.0
    %158 = vmatpush1.msra.mxu0 0.0
    %159 = vmatprep.subr.mxu0 0.0
    %160 = vmatpush1.msra.mxu0 0.0
    %161 = vmatprep.subr.mxu0 0.0
    %162 = vmatpush1.msra.mxu0 0.0
    %163 = vmatprep.subr.mxu0 0.0
    %164 = vmatpush1.msra.mxu0 0.0
    %165 = vmatprep.subr.mxu0 0.0
    %166 = vmatpush1.msra.mxu0 0.0
    %167 = vmatprep.subr.mxu0 0.0
    %168 = vmatpush1.msra.mxu0 0.0
    %169 = vmatprep.subr.mxu0 0.0
    %170 = vmatpush1.msra.mxu0 0.0
    %171 = vmatprep.subr.mxu0 0.0
    %172 = vmatpush1.msra.mxu0 0.0
    %173 = vmatprep.subr.mxu0 0.0
    %174 = vmatpush1.msra.mxu0 0.0
    %175 = vmatprep.subr.mxu0 0.0
    %176 = vmatpush1.msra.mxu0 0.0
    %177 = vmatprep.subr.mxu0 0.0
    %178 = vmatpush1.msra.mxu0 0.0
    %179 = vmatprep.subr.mxu0 0.0
    %180 = vmatpush1.msra.mxu0 0.0
    %181 = vmatprep.mubr.f32.mxu0 0.0
    %182 = vmatmul.mubr.f32.gmra.mrb[0].mxu0 %v70
    %v183 = vpop.f32.mrb[0].mxu0
    %v184 = vadd.f32 %v66, %v183
    %v185 = vpop.f32.mrb[0].mxu0
    %186 = vmatprep.mubr.f32.mxu0 0.0
    %187 = vmatmul.mubr.f32.gmra.mrb[0].mxu0 %v73
    %v188 = vpop.f32.mrb[0].mxu0
    %v189 = vadd.f32 %v66, %v188
    %v190 = vpop.f32.mrb[0].mxu0
    %191 = vmatprep.mubr.f32.mxu0 0.0
    %192 = vmatmul.mubr.f32.gmra.mrb[0].mxu0 %v76
    %v193 = vpop.f32.mrb[0].mxu0
    %v194 = vadd.f32 %v66, %v193
    %v195 = vpop.f32.mrb[0].mxu0
    %196 = vmatprep.mubr.f32.mxu0 0.0
    %197 = vmatmul.mubr.f32.gmra.mrb[0].mxu0 %v79
    %v198 = vpop.f32.mrb[0].mxu0
    %v199 = vadd.f32 %v66, %v198
    %v200 = vpop.f32.mrb[0].mxu0
    %201 = vmatprep.mubr.f32.mxu0 0.0
    %202 = vmatmul.mubr.f32.gmra.mrb[0].mxu0 %v82
    %v203 = vpop.f32.mrb[0].mxu0
    %v204 = vadd.f32 %v66, %v203
    %v205 = vpop.f32.mrb[0].mxu0
    %206 = vmatprep.mubr.f32.mxu0 0.0
    %207 = vmatmul.mubr.f32.gmra.mrb[0].mxu0 %v85
    %v208 = vpop.f32.mrb[0].mxu0
    %v209 = vadd.f32 %v66, %v208
    %v210 = vpop.f32.mrb[0].mxu0
    %211 = vmatprep.mubr.f32.mxu0 0.0
    %212 = vmatmul.mubr.f32.gmra.mrb[0].mxu0 %v88
    %v213 = vpop.f32.mrb[0].mxu0
    %v214 = vadd.f32 %v66, %v213
    %v215 = vpop.f32.mrb[0].mxu0
    %216 = vmatprep.mubr.f32.mxu0 0.0
    %217 = vmatmul.mubr.f32.gmra.mrb[0].mxu0 %v91
    %v218 = vpop.f32.mrb[0].mxu0
    %v219 = vadd.f32 %v66, %v218
    %v220 = vpop.f32.mrb[0].mxu0
    %221 = vmatprep.mubr.f32.mxu0 0.0
    %222 = vmatmul.mubr.f32.gmra.mrb[0].mxu0 %v94
    %v223 = vpop.f32.mrb[0].mxu0
    %v224 = vadd.f32 %v66, %v223
    %v225 = vpop.f32.mrb[0].mxu0
    %226 = vmatprep.mubr.f32.mxu0 0.0
    %227 = vmatmul.mubr.f32.gmra.mrb[0].mxu0 %v97
    %v228 = vpop.f32.mrb[0].mxu0
    %v229 = vadd.f32 %v66, %v228
    %v230 = vpop.f32.mrb[0].mxu0
    %231 = vmatprep.mubr.f32.mxu0 0.0
    %232 = vmatmul.mubr.f32.gmra.mrb[0].mxu0 %v100
    %v233 = vpop.f32.mrb[0].mxu0
    %v234 = vadd.f32 %v66, %v233
    %v235 = vpop.f32.mrb[0].mxu0
    %236 = vmatprep.mubr.f32.mxu0 0.0
    %237 = vmatmul.mubr.f32.gmra.mrb[0].mxu0 %v103
    %v238 = vpop.f32.mrb[0].mxu0
    %v239 = vadd.f32 %v66, %v238
    %v240 = vpop.f32.mrb[0].mxu0
    %241 = vmatprep.mubr.f32.mxu0 0.0
    %242 = vmatmul.mubr.f32.gmra.mrb[0].mxu0 %v106
    %v243 = vpop.f32.mrb[0].mxu0
    %v244 = vadd.f32 %v66, %v243
    %v245 = vpop.f32.mrb[0].mxu0
    %246 = vmatprep.mubr.f32.mxu0 0.0
    %247 = vmatmul.mubr.f32.gmra.mrb[0].mxu0 %v109
    %v248 = vpop.f32.mrb[0].mxu0
    %v249 = vadd.f32 %v66, %v248
    %v250 = vpop.f32.mrb[0].mxu0
    %251 = vmatprep.mubr.f32.mxu0 0.0
    %252 = vmatmul.mubr.f32.gmra.mrb[0].mxu0 %v112
    %v253 = vpop.f32.mrb[0].mxu0
    %v254 = vadd.f32 %v66, %v253
    %v255 = vpop.f32.mrb[0].mxu0
    %256 = vmatprep.mubr.f32.mxu0 0.0
    %257 = vmatmul.mubr.f32.gmra.mrb[0].mxu0 %v115
    %v258 = vpop.f32.mrb[0].mxu0
    %v259 = vadd.f32 %v66, %v258
    %v260 = vpop.f32.mrb[0].mxu0
    %261 = vdwg.mxu0
    %v262 = vmax.f32 %v184, 0.0
    %v263 = vmax.f32 %v189, 0.0
    %v264 = vmax.f32 %v194, 0.0
    %v265 = vmax.f32 %v199, 0.0
    %v266 = vmax.f32 %v204, 0.0
    %v267 = vmax.f32 %v209, 0.0
    %v268 = vmax.f32 %v214, 0.0
    %v269 = vmax.f32 %v219, 0.0
    %v270 = vmax.f32 %v224, 0.0
    %v271 = vmax.f32 %v229, 0.0
    %v272 = vmax.f32 %v234, 0.0
    %v273 = vmax.f32 %v239, 0.0
    %v274 = vmax.f32 %v244, 0.0
    %v275 = vmax.f32 %v249, 0.0
    %v276 = vmax.f32 %v254, 0.0
    %v277 = vmax.f32 %v259, 0.0
    %v278 = vld [vmem:[%s3] sm:$0xff]
    %v279 = vld [vmem:[%s3 + $0x8] sm:$0xff]
    %v280 = vld [vmem:[%s3 + $0x10] sm:$0xff]
    %v281 = vld [vmem:[%s3 + $0x18] sm:$0xff]
    %v282 = vld [vmem:[%s3 + $0x20] sm:$0xff]
    %v283 = vld [vmem:[%s3 + $0x28] sm:$0xff]
    %v284 = vld [vmem:[%s3 + $0x30] sm:$0xff]
    %v285 = vld [vmem:[%s3 + $0x38] sm:$0xff]
    %v286 = vld [vmem:[%s3 + $0x40] sm:$0xff]
    %v287 = vld [vmem:[%s3 + $0x48] sm:$0xff]
    %v288 = vld [vmem:[%s3 + $0x50] sm:$0xff]
    %v289 = vld [vmem:[%s3 + $0x58] sm:$0xff]
    %v290 = vld [vmem:[%s3 + $0x60] sm:$0xff]
    %v291 = vld [vmem:[%s3 + $0x68] sm:$0xff]
    %v292 = vld [vmem:[%s3 + $0x70] sm:$0xff]
    %v293 = vld [vmem:[%s3 + $0x78] sm:$0xff]
    %v294 = vld [vmem:[%s4] sm:$0x1]
    %v296 = vlaneseq
    %v297 = vshrl.u32 %v296, 7
    %v298 = vsub.s32 0, %v297
    %v299 = vrot.slane %v294, %v298
    %301 = vmatprep.subr.mxu0 0.0
    %302 = vmatpush1.msra.mxu0 %v278
    %303 = vmatprep.subr.mxu0 0.0
    %304 = vmatpush1.msra.mxu0 %v279
    %305 = vmatprep.subr.mxu0 0.0
    %306 = vmatpush1.msra.mxu0 %v280
    %307 = vmatprep.subr.mxu0 0.0
    %308 = vmatpush1.msra.mxu0 %v281
    %309 = vmatprep.subr.mxu0 0.0
    %310 = vmatpush1.msra.mxu0 %v282
    %311 = vmatprep.subr.mxu0 0.0
    %312 = vmatpush1.msra.mxu0 %v283
    %313 = vmatprep.subr.mxu0 0.0
    %314 = vmatpush1.msra.mxu0 %v284
    %315 = vmatprep.subr.mxu0 0.0
    %316 = vmatpush1.msra.mxu0 %v285
    %317 = vmatprep.subr.mxu0 0.0
    %318 = vmatpush1.msra.mxu0 %v286
    %319 = vmatprep.subr.mxu0 0.0
    %320 = vmatpush1.msra.mxu0 %v287
    %321 = vmatprep.subr.mxu0 0.0
    %322 = vmatpush1.msra.mxu0 %v288
    %323 = vmatprep.subr.mxu0 0.0
    %324 = vmatpush1.msra.mxu0 %v289
    %325 = vmatprep.subr.mxu0 0.0
    %326 = vmatpush1.msra.mxu0 %v290
    %327 = vmatprep.subr.mxu0 0.0
    %328 = vmatpush1.msra.mxu0 %v291
    %329 = vmatprep.subr.mxu0 0.0
    %330 = vmatpush1.msra.mxu0 %v292
    %331 = vmatprep.subr.mxu0 0.0
    %332 = vmatpush1.msra.mxu0 %v293
    %333 = vmatprep.subr.mxu0 0.0
    %334 = vmatpush1.msra.mxu0 0.0
    %335 = vmatprep.subr.mxu0 0.0
    %336 = vmatpush1.msra.mxu0 0.0
    %337 = vmatprep.subr.mxu0 0.0
    %338 = vmatpush1.msra.mxu0 0.0
    %339 = vmatprep.subr.mxu0 0.0
    %340 = vmatpush1.msra.mxu0 0.0
    %341 = vmatprep.subr.mxu0 0.0
    %342 = vmatpush1.msra.mxu0 0.0
    %343 = vmatprep.subr.mxu0 0.0
    %344 = vmatpush1.msra.mxu0 0.0
    %345 = vmatprep.subr.mxu0 0.0
    %346 = vmatpush1.msra.mxu0 0.0
    %347 = vmatprep.subr.mxu0 0.0
    %348 = vmatpush1.msra.mxu0 0.0
    %349 = vmatprep.subr.mxu0 0.0
    %350 = vmatpush1.msra.mxu0 0.0
    %351 = vmatprep.subr.mxu0 0.0
    %352 = vmatpush1.msra.mxu0 0.0
    %353 = vmatprep.subr.mxu0 0.0
    %354 = vmatpush1.msra.mxu0 0.0
    %355 = vmatprep.subr.mxu0 0.0
    %356 = vmatpush1.msra.mxu0 0.0
    %357 = vmatprep.subr.mxu0 0.0
    %358 = vmatpush1.msra.mxu0 0.0
    %359 = vmatprep.subr.mxu0 0.0
    %360 = vmatpush1.msra.mxu0 0.0
    %361 = vmatprep.subr.mxu0 0.0
    %362 = vmatpush1.msra.mxu0 0.0
    %363 = vmatprep.subr.mxu0 0.0
    %364 = vmatpush1.msra.mxu0 0.0
    %365 = vmatprep.mubr.f32.mxu0 0.0
    %366 = vmatmul.mubr.f32.gmra.mrb[0].mxu0 %v262
    %v367 = vpop.f32.mrb[0].mxu0
    %v368 = vadd.f32 %v299, %v367
    %v369 = vpop.f32.mrb[0].mxu0
    %370 = vmatprep.mubr.f32.mxu0 0.0
    %371 = vmatmul.mubr.f32.gmra.mrb[0].mxu0 %v263
    %v372 = vpop.f32.mrb[0].mxu0
    %v373 = vadd.f32 %v299, %v372
    %v374 = vpop.f32.mrb[0].mxu0
    %375 = vmatprep.mubr.f32.mxu0 0.0
    %376 = vmatmul.mubr.f32.gmra.mrb[0].mxu0 %v264
    %v377 = vpop.f32.mrb[0].mxu0
    %v378 = vadd.f32 %v299, %v377
    %v379 = vpop.f32.mrb[0].mxu0
    %380 = vmatprep.mubr.f32.mxu0 0.0
    %381 = vmatmul.mubr.f32.gmra.mrb[0].mxu0 %v265
    %v382 = vpop.f32.mrb[0].mxu0
    %v383 = vadd.f32 %v299, %v382
    %v384 = vpop.f32.mrb[0].mxu0
    %385 = vmatprep.mubr.f32.mxu0 0.0
    %386 = vmatmul.mubr.f32.gmra.mrb[0].mxu0 %v266
    %v387 = vpop.f32.mrb[0].mxu0
    %v388 = vadd.f32 %v299, %v387
    %v389 = vpop.f32.mrb[0].mxu0
    %390 = vmatprep.mubr.f32.mxu0 0.0
    %391 = vmatmul.mubr.f32.gmra.mrb[0].mxu0 %v267
    %v392 = vpop.f32.mrb[0].mxu0
    %v393 = vadd.f32 %v299, %v392
    %v394 = vpop.f32.mrb[0].mxu0
    %395 = vmatprep.mubr.f32.mxu0 0.0
    %396 = vmatmul.mubr.f32.gmra.mrb[0].mxu0 %v268
    %v397 = vpop.f32.mrb[0].mxu0
    %v398 = vadd.f32 %v299, %v397
    %v399 = vpop.f32.mrb[0].mxu0
    %400 = vmatprep.mubr.f32.mxu0 0.0
    %401 = vmatmul.mubr.f32.gmra.mrb[0].mxu0 %v269
    %v402 = vpop.f32.mrb[0].mxu0
    %v403 = vadd.f32 %v299, %v402
    %v404 = vpop.f32.mrb[0].mxu0
    %405 = vmatprep.mubr.f32.mxu0 0.0
    %406 = vmatmul.mubr.f32.gmra.mrb[0].mxu0 %v270
    %v407 = vpop.f32.mrb[0].mxu0
    %v408 = vadd.f32 %v299, %v407
    %v409 = vpop.f32.mrb[0].mxu0
    %410 = vmatprep.mubr.f32.mxu0 0.0
    %411 = vmatmul.mubr.f32.gmra.mrb[0].mxu0 %v271
    %v412 = vpop.f32.mrb[0].mxu0
    %v413 = vadd.f32 %v299, %v412
    %v414 = vpop.f32.mrb[0].mxu0
    %415 = vmatprep.mubr.f32.mxu0 0.0
    %416 = vmatmul.mubr.f32.gmra.mrb[0].mxu0 %v272
    %v417 = vpop.f32.mrb[0].mxu0
    %v418 = vadd.f32 %v299, %v417
    %v419 = vpop.f32.mrb[0].mxu0
    %420 = vmatprep.mubr.f32.mxu0 0.0
    %421 = vmatmul.mubr.f32.gmra.mrb[0].mxu0 %v273
    %v422 = vpop.f32.mrb[0].mxu0
    %v423 = vadd.f32 %v299, %v422
    %v424 = vpop.f32.mrb[0].mxu0
    %425 = vmatprep.mubr.f32.mxu0 0.0
    %426 = vmatmul.mubr.f32.gmra.mrb[0].mxu0 %v274
    %v427 = vpop.f32.mrb[0].mxu0
    %v428 = vadd.f32 %v299, %v427
    %v429 = vpop.f32.mrb[0].mxu0
    %430 = vmatprep.mubr.f32.mxu0 0.0
    %431 = vmatmul.mubr.f32.gmra.mrb[0].mxu0 %v275
    %v432 = vpop.f32.mrb[0].mxu0
    %v433 = vadd.f32 %v299, %v432
    %v434 = vpop.f32.mrb[0].mxu0
    %435 = vmatprep.mubr.f32.mxu0 0.0
    %436 = vmatmul.mubr.f32.gmra.mrb[0].mxu0 %v276
    %v437 = vpop.f32.mrb[0].mxu0
    %v438 = vadd.f32 %v299, %v437
    %v439 = vpop.f32.mrb[0].mxu0
    %440 = vmatprep.mubr.f32.mxu0 0.0
    %441 = vmatmul.mubr.f32.gmra.mrb[0].mxu0 %v277
    %v442 = vpop.f32.mrb[0].mxu0
    %v443 = vadd.f32 %v299, %v442
    %v444 = vpop.f32.mrb[0].mxu0
    %445 = vdwg.mxu0
    %v446 = vmax.f32 %v368, 0.0
    %v447 = vmax.f32 %v373, 0.0
    %v448 = vmax.f32 %v378, 0.0
    %v449 = vmax.f32 %v383, 0.0
    %v450 = vmax.f32 %v388, 0.0
    %v451 = vmax.f32 %v393, 0.0
    %v452 = vmax.f32 %v398, 0.0
    %v453 = vmax.f32 %v403, 0.0
    %v454 = vmax.f32 %v408, 0.0
    %v455 = vmax.f32 %v413, 0.0
    %v456 = vmax.f32 %v418, 0.0
    %v457 = vmax.f32 %v423, 0.0
    %v458 = vmax.f32 %v428, 0.0
    %v459 = vmax.f32 %v433, 0.0
    %v460 = vmax.f32 %v438, 0.0
    %v461 = vmax.f32 %v443, 0.0
    %v462 = vld [vmem:[#allocation2] sm:$0xff]
    %v463 = vld [vmem:[#allocation2 + $0x8] sm:$0xff]
    %v464 = vld [vmem:[#allocation2 + $0x10] sm:$0xff]
    %v465 = vld [vmem:[#allocation2 + $0x18] sm:$0xff]
    %v466 = vld [vmem:[#allocation2 + $0x20] sm:$0xff]
    %v467 = vld [vmem:[#allocation2 + $0x28] sm:$0xff]
    %v468 = vld [vmem:[#allocation2 + $0x30] sm:$0xff]
    %v469 = vld [vmem:[#allocation2 + $0x38] sm:$0xff]
    %v470 = vld [vmem:[#allocation2 + $0x40] sm:$0xff]
    %v471 = vld [vmem:[#allocation2 + $0x48] sm:$0xff]
    %v472 = vld [vmem:[#allocation2 + $0x50] sm:$0xff]
    %v473 = vld [vmem:[#allocation2 + $0x58] sm:$0xff]
    %v474 = vld [vmem:[#allocation2 + $0x60] sm:$0xff]
    %v475 = vld [vmem:[#allocation2 + $0x68] sm:$0xff]
    %v476 = vld [vmem:[#allocation2 + $0x70] sm:$0xff]
    %v477 = vld [vmem:[#allocation2 + $0x78] sm:$0xff]
    %v478 = vld [vmem:[%s6] sm:$0x1]
    %v480 = vlaneseq
    %v481 = vshrl.u32 %v480, 7
    %v482 = vsub.s32 0, %v481
    %v483 = vrot.slane %v478, %v482
    %485 = vmatprep.subr.mxu0 0.0
    %486 = vmatpush1.msra.mxu0 %v462
    %487 = vmatprep.subr.mxu0 0.0
    %488 = vmatpush1.msra.mxu0 %v463
    %489 = vmatprep.subr.mxu0 0.0
    %490 = vmatpush1.msra.mxu0 %v464
    %491 = vmatprep.subr.mxu0 0.0
    %492 = vmatpush1.msra.mxu0 %v465
    %493 = vmatprep.subr.mxu0 0.0
    %494 = vmatpush1.msra.mxu0 %v466
    %495 = vmatprep.subr.mxu0 0.0
    %496 = vmatpush1.msra.mxu0 %v467
    %497 = vmatprep.subr.mxu0 0.0
    %498 = vmatpush1.msra.mxu0 %v468
    %499 = vmatprep.subr.mxu0 0.0
    %500 = vmatpush1.msra.mxu0 %v469
    %501 = vmatprep.subr.mxu0 0.0
    %502 = vmatpush1.msra.mxu0 %v470
    %503 = vmatprep.subr.mxu0 0.0
    %504 = vmatpush1.msra.mxu0 %v471
    %505 = vmatprep.subr.mxu0 0.0
    %506 = vmatpush1.msra.mxu0 %v472
    %507 = vmatprep.subr.mxu0 0.0
    %508 = vmatpush1.msra.mxu0 %v473
    %509 = vmatprep.subr.mxu0 0.0
    %510 = vmatpush1.msra.mxu0 %v474
    %511 = vmatprep.subr.mxu0 0.0
    %512 = vmatpush1.msra.mxu0 %v475
    %513 = vmatprep.subr.mxu0 0.0
    %514 = vmatpush1.msra.mxu0 %v476
    %515 = vmatprep.subr.mxu0 0.0
    %516 = vmatpush1.msra.mxu0 %v477
    %517 = vmatprep.subr.mxu0 0.0
    %518 = vmatpush1.msra.mxu0 0.0
    %519 = vmatprep.subr.mxu0 0.0
    %520 = vmatpush1.msra.mxu0 0.0
    %521 = vmatprep.subr.mxu0 0.0
    %522 = vmatpush1.msra.mxu0 0.0
    %523 = vmatprep.subr.mxu0 0.0
    %524 = vmatpush1.msra.mxu0 0.0
    %525 = vmatprep.subr.mxu0 0.0
    %526 = vmatpush1.msra.mxu0 0.0
    %527 = vmatprep.subr.mxu0 0.0
    %528 = vmatpush1.msra.mxu0 0.0
    %529 = vmatprep.subr.mxu0 0.0
    %530 = vmatpush1.msra.mxu0 0.0
    %531 = vmatprep.subr.mxu0 0.0
    %532 = vmatpush1.msra.mxu0 0.0
    %533 = vmatprep.subr.mxu0 0.0
    %534 = vmatpush1.msra.mxu0 0.0
    %535 = vmatprep.subr.mxu0 0.0
    %536 = vmatpush1.msra.mxu0 0.0
    %537 = vmatprep.subr.mxu0 0.0
    %538 = vmatpush1.msra.mxu0 0.0
    %539 = vmatprep.subr.mxu0 0.0
    %540 = vmatpush1.msra.mxu0 0.0
    %541 = vmatprep.subr.mxu0 0.0
    %542 = vmatpush1.msra.mxu0 0.0
    %543 = vmatprep.subr.mxu0 0.0
    %544 = vmatpush1.msra.mxu0 0.0
    %545 = vmatprep.subr.mxu0 0.0
    %546 = vmatpush1.msra.mxu0 0.0
    %547 = vmatprep.subr.mxu0 0.0
    %548 = vmatpush1.msra.mxu0 0.0
    %549 = vmatprep.mubr.f32.mxu0 0.0
    %550 = vmatmul.mubr.f32.gmra.mrb[0].mxu0 %v446
    %v551 = vpop.f32.mrb[0].mxu0
    %v552 = vadd.f32 %v483, %v551
    %v553 = vpop.f32.mrb[0].mxu0
    %554 = vmatprep.mubr.f32.mxu0 0.0
    %555 = vmatmul.mubr.f32.gmra.mrb[0].mxu0 %v447
    %v556 = vpop.f32.mrb[0].mxu0
    %v557 = vadd.f32 %v483, %v556
    %v558 = vpop.f32.mrb[0].mxu0
    %559 = vmatprep.mubr.f32.mxu0 0.0
    %560 = vmatmul.mubr.f32.gmra.mrb[0].mxu0 %v448
    %v561 = vpop.f32.mrb[0].mxu0
    %v562 = vadd.f32 %v483, %v561
    %v563 = vpop.f32.mrb[0].mxu0
    %564 = vmatprep.mubr.f32.mxu0 0.0
    %565 = vmatmul.mubr.f32.gmra.mrb[0].mxu0 %v449
    %v566 = vpop.f32.mrb[0].mxu0
    %v567 = vadd.f32 %v483, %v566
    %v568 = vpop.f32.mrb[0].mxu0
    %569 = vmatprep.mubr.f32.mxu0 0.0
    %570 = vmatmul.mubr.f32.gmra.mrb[0].mxu0 %v450
    %v571 = vpop.f32.mrb[0].mxu0
    %v572 = vadd.f32 %v483, %v571
    %v573 = vpop.f32.mrb[0].mxu0
    %574 = vmatprep.mubr.f32.mxu0 0.0
    %575 = vmatmul.mubr.f32.gmra.mrb[0].mxu0 %v451
    %v576 = vpop.f32.mrb[0].mxu0
    %v577 = vadd.f32 %v483, %v576
    %v578 = vpop.f32.mrb[0].mxu0
    %579 = vmatprep.mubr.f32.mxu0 0.0
    %580 = vmatmul.mubr.f32.gmra.mrb[0].mxu0 %v452
    %v581 = vpop.f32.mrb[0].mxu0
    %v582 = vadd.f32 %v483, %v581
    %v583 = vpop.f32.mrb[0].mxu0
    %584 = vmatprep.mubr.f32.mxu0 0.0
    %585 = vmatmul.mubr.f32.gmra.mrb[0].mxu0 %v453
    %v586 = vpop.f32.mrb[0].mxu0
    %v587 = vadd.f32 %v483, %v586
    %v588 = vpop.f32.mrb[0].mxu0
    %589 = vmatprep.mubr.f32.mxu0 0.0
    %590 = vmatmul.mubr.f32.gmra.mrb[0].mxu0 %v454
    %v591 = vpop.f32.mrb[0].mxu0
    %v592 = vadd.f32 %v483, %v591
    %v593 = vpop.f32.mrb[0].mxu0
    %594 = vmatprep.mubr.f32.mxu0 0.0
    %595 = vmatmul.mubr.f32.gmra.mrb[0].mxu0 %v455
    %v596 = vpop.f32.mrb[0].mxu0
    %v597 = vadd.f32 %v483, %v596
    %v598 = vpop.f32.mrb[0].mxu0
    %599 = vmatprep.mubr.f32.mxu0 0.0
    %600 = vmatmul.mubr.f32.gmra.mrb[0].mxu0 %v456
    %v601 = vpop.f32.mrb[0].mxu0
    %v602 = vadd.f32 %v483, %v601
    %v603 = vpop.f32.mrb[0].mxu0
    %604 = vmatprep.mubr.f32.mxu0 0.0
    %605 = vmatmul.mubr.f32.gmra.mrb[0].mxu0 %v457
    %v606 = vpop.f32.mrb[0].mxu0
    %v607 = vadd.f32 %v483, %v606
    %v608 = vpop.f32.mrb[0].mxu0
    %609 = vmatprep.mubr.f32.mxu0 0.0
    %610 = vmatmul.mubr.f32.gmra.mrb[0].mxu0 %v458
    %v611 = vpop.f32.mrb[0].mxu0
    %v612 = vadd.f32 %v483, %v611
    %v613 = vpop.f32.mrb[0].mxu0
    %614 = vmatprep.mubr.f32.mxu0 0.0
    %615 = vmatmul.mubr.f32.gmra.mrb[0].mxu0 %v459
    %v616 = vpop.f32.mrb[0].mxu0
    %v617 = vadd.f32 %v483, %v616
    %v618 = vpop.f32.mrb[0].mxu0
    %619 = vmatprep.mubr.f32.mxu0 0.0
    %620 = vmatmul.mubr.f32.gmra.mrb[0].mxu0 %v460
    %v621 = vpop.f32.mrb[0].mxu0
    %v622 = vadd.f32 %v483, %v621
    %v623 = vpop.f32.mrb[0].mxu0
    %624 = vmatprep.mubr.f32.mxu0 0.0
    %625 = vmatmul.mubr.f32.gmra.mrb[0].mxu0 %v461
    %v626 = vpop.f32.mrb[0].mxu0
    %v627 = vadd.f32 %v483, %v626
    %v628 = vpop.f32.mrb[0].mxu0
    %629 = vdwg.mxu0
    %v630 = vlaneseq
    %v631 = vand.u32 %v630, 127
    %vm632 = vcmp.ge.s32.totalorder %v631, 0
    %vm633 = vcmp.lt.s32.totalorder %v631, 3
    %vm634 = vmand %vm632, %vm633
    %vm635 = vcmp.ge.s32.totalorder %v631, 3
    %vm636 = vcmp.lt.s32.totalorder %v631, 7
    %vm637 = vmand %vm635, %vm636
    %vm638 = vcmp.ge.s32.totalorder %v631, 7
    %vm639 = vcmp.lt.s32.totalorder %v631, 12
    %vm640 = vmand %vm638, %vm639
    %v641 = vsel %vm634, 1, 0
    %vm642 = vcmp.eq.s32.totalorder %v641, 1
    %v643 = vsel %vm642, %v552, -inf
    %v644 = vsel %vm642, %v557, -inf
    %v645 = vsel %vm642, %v562, -inf
    %v646 = vsel %vm642, %v567, -inf
    %v647 = vsel %vm642, %v572, -inf
    %v648 = vsel %vm642, %v577, -inf
    %v649 = vsel %vm642, %v582, -inf
    %v650 = vsel %vm642, %v587, -inf
    %v651 = vsel %vm642, %v592, -inf
    %v652 = vsel %vm642, %v597, -inf
    %v653 = vsel %vm642, %v602, -inf
    %v654 = vsel %vm642, %v607, -inf
    %v655 = vsel %vm642, %v612, -inf
    %v656 = vsel %vm642, %v617, -inf
    %v657 = vsel %vm642, %v622, -inf
    %v658 = vsel %vm642, %v627, -inf
    %659 = vmax.xlane.f32.xlu0 %v643
    %v660 = vpop.xlane.xlu0 %659
    %661 = vmax.xlane.f32.xlu0 %v644
    %v662 = vpop.xlane.xlu0 %661
    %663 = vmax.xlane.f32.xlu0 %v645
    %v664 = vpop.xlane.xlu0 %663
    %665 = vmax.xlane.f32.xlu0 %v646
    %v666 = vpop.xlane.xlu0 %665
    %667 = vmax.xlane.f32.xlu0 %v647
    %v668 = vpop.xlane.xlu0 %667
    %669 = vmax.xlane.f32.xlu0 %v648
    %v670 = vpop.xlane.xlu0 %669
    %671 = vmax.xlane.f32.xlu0 %v649
    %v672 = vpop.xlane.xlu0 %671
    %673 = vmax.xlane.f32.xlu0 %v650
    %v674 = vpop.xlane.xlu0 %673
    %675 = vmax.xlane.f32.xlu0 %v651
    %v676 = vpop.xlane.xlu0 %675
    %677 = vmax.xlane.f32.xlu0 %v652
    %v678 = vpop.xlane.xlu0 %677
    %679 = vmax.xlane.f32.xlu0 %v653
    %v680 = vpop.xlane.xlu0 %679
    %681 = vmax.xlane.f32.xlu0 %v654
    %v682 = vpop.xlane.xlu0 %681
    %683 = vmax.xlane.f32.xlu0 %v655
    %v684 = vpop.xlane.xlu0 %683
    %685 = vmax.xlane.f32.xlu0 %v656
    %v686 = vpop.xlane.xlu0 %685
    %687 = vmax.xlane.f32.xlu0 %v657
    %v688 = vpop.xlane.xlu0 %687
    %689 = vmax.xlane.f32.xlu0 %v658
    %v690 = vpop.xlane.xlu0 %689
    %v691 = vsel %vm642, %v660, 0.0
    %v692 = vsel %vm642, %v662, 0.0
    %v693 = vsel %vm642, %v664, 0.0
    %v694 = vsel %vm642, %v666, 0.0
    %v695 = vsel %vm642, %v668, 0.0
    %v696 = vsel %vm642, %v670, 0.0
    %v697 = vsel %vm642, %v672, 0.0
    %v698 = vsel %vm642, %v674, 0.0
    %v699 = vsel %vm642, %v676, 0.0
    %v700 = vsel %vm642, %v678, 0.0
    %v701 = vsel %vm642, %v680, 0.0
    %v702 = vsel %vm642, %v682, 0.0
    %v703 = vsel %vm642, %v684, 0.0
    %v704 = vsel %vm642, %v686, 0.0
    %v705 = vsel %vm642, %v688, 0.0
    %v706 = vsel %vm642, %v690, 0.0
    %v707 = vsel %vm637, 1, 0
    %vm708 = vcmp.eq.s32.totalorder %v707, 1
    %v709 = vsel %vm708, %v552, -inf
    %v710 = vsel %vm708, %v557, -inf
    %v711 = vsel %vm708, %v562, -inf
    %v712 = vsel %vm708, %v567, -inf
    %v713 = vsel %vm708, %v572, -inf
    %v714 = vsel %vm708, %v577, -inf
    %v715 = vsel %vm708, %v582, -inf
    %v716 = vsel %vm708, %v587, -inf
    %v717 = vsel %vm708, %v592, -inf
    %v718 = vsel %vm708, %v597, -inf
    %v719 = vsel %vm708, %v602, -inf
    %v720 = vsel %vm708, %v607, -inf
    %v721 = vsel %vm708, %v612, -inf
    %v722 = vsel %vm708, %v617, -inf
    %v723 = vsel %vm708, %v622, -inf
    %v724 = vsel %vm708, %v627, -inf
    %725 = vmax.xlane.f32.xlu0 %v709
    %v726 = vpop.xlane.xlu0 %725
    %727 = vmax.xlane.f32.xlu0 %v710
    %v728 = vpop.xlane.xlu0 %727
    %729 = vmax.xlane.f32.xlu0 %v711
    %v730 = vpop.xlane.xlu0 %729
    %731 = vmax.xlane.f32.xlu0 %v712
    %v732 = vpop.xlane.xlu0 %731
    %733 = vmax.xlane.f32.xlu0 %v713
    %v734 = vpop.xlane.xlu0 %733
    %735 = vmax.xlane.f32.xlu0 %v714
    %v736 = vpop.xlane.xlu0 %735
    %737 = vmax.xlane.f32.xlu0 %v715
    %v738 = vpop.xlane.xlu0 %737
    %739 = vmax.xlane.f32.xlu0 %v716
    %v740 = vpop.xlane.xlu0 %739
    %741 = vmax.xlane.f32.xlu0 %v717
    %v742 = vpop.xlane.xlu0 %741
    %743 = vmax.xlane.f32.xlu0 %v718
    %v744 = vpop.xlane.xlu0 %743
    %745 = vmax.xlane.f32.xlu0 %v719
    %v746 = vpop.xlane.xlu0 %745
    %747 = vmax.xlane.f32.xlu0 %v720
    %v748 = vpop.xlane.xlu0 %747
    %749 = vmax.xlane.f32.xlu0 %v721
    %v750 = vpop.xlane.xlu0 %749
    %751 = vmax.xlane.f32.xlu0 %v722
    %v752 = vpop.xlane.xlu0 %751
    %753 = vmax.xlane.f32.xlu0 %v723
    %v754 = vpop.xlane.xlu0 %753
    %755 = vmax.xlane.f32.xlu0 %v724
    %v756 = vpop.xlane.xlu0 %755
    %v757 = vsel %vm708, %v726, %v691
    %v758 = vsel %vm708, %v728, %v692
    %v759 = vsel %vm708, %v730, %v693
    %v760 = vsel %vm708, %v732, %v694
    %v761 = vsel %vm708, %v734, %v695
    %v762 = vsel %vm708, %v736, %v696
    %v763 = vsel %vm708, %v738, %v697
    %v764 = vsel %vm708, %v740, %v698
    %v765 = vsel %vm708, %v742, %v699
    %v766 = vsel %vm708, %v744, %v700
    %v767 = vsel %vm708, %v746, %v701
    %v768 = vsel %vm708, %v748, %v702
    %v769 = vsel %vm708, %v750, %v703
    %v770 = vsel %vm708, %v752, %v704
    %v771 = vsel %vm708, %v754, %v705
    %v772 = vsel %vm708, %v756, %v706
    %v773 = vsel %vm640, 1, 0
    %vm774 = vcmp.eq.s32.totalorder %v773, 1
    %v775 = vsel %vm774, %v552, -inf
    %v776 = vsel %vm774, %v557, -inf
    %v777 = vsel %vm774, %v562, -inf
    %v778 = vsel %vm774, %v567, -inf
    %v779 = vsel %vm774, %v572, -inf
    %v780 = vsel %vm774, %v577, -inf
    %v781 = vsel %vm774, %v582, -inf
    %v782 = vsel %vm774, %v587, -inf
    %v783 = vsel %vm774, %v592, -inf
    %v784 = vsel %vm774, %v597, -inf
    %v785 = vsel %vm774, %v602, -inf
    %v786 = vsel %vm774, %v607, -inf
    %v787 = vsel %vm774, %v612, -inf
    %v788 = vsel %vm774, %v617, -inf
    %v789 = vsel %vm774, %v622, -inf
    %v790 = vsel %vm774, %v627, -inf
    %791 = vmax.xlane.f32.xlu0 %v775
    %v792 = vpop.xlane.xlu0 %791
    %793 = vmax.xlane.f32.xlu0 %v776
    %v794 = vpop.xlane.xlu0 %793
    %795 = vmax.xlane.f32.xlu0 %v777
    %v796 = vpop.xlane.xlu0 %795
    %797 = vmax.xlane.f32.xlu0 %v778
    %v798 = vpop.xlane.xlu0 %797
    %799 = vmax.xlane.f32.xlu0 %v779
    %v800 = vpop.xlane.xlu0 %799
    %801 = vmax.xlane.f32.xlu0 %v780
    %v802 = vpop.xlane.xlu0 %801
    %803 = vmax.xlane.f32.xlu0 %v781
    %v804 = vpop.xlane.xlu0 %803
    %805 = vmax.xlane.f32.xlu0 %v782
    %v806 = vpop.xlane.xlu0 %805
    %807 = vmax.xlane.f32.xlu0 %v783
    %v808 = vpop.xlane.xlu0 %807
    %809 = vmax.xlane.f32.xlu0 %v784
    %v810 = vpop.xlane.xlu0 %809
    %811 = vmax.xlane.f32.xlu0 %v785
    %v812 = vpop.xlane.xlu0 %811
    %813 = vmax.xlane.f32.xlu0 %v786
    %v814 = vpop.xlane.xlu0 %813
    %815 = vmax.xlane.f32.xlu0 %v787
    %v816 = vpop.xlane.xlu0 %815
    %817 = vmax.xlane.f32.xlu0 %v788
    %v818 = vpop.xlane.xlu0 %817
    %819 = vmax.xlane.f32.xlu0 %v789
    %v820 = vpop.xlane.xlu0 %819
    %821 = vmax.xlane.f32.xlu0 %v790
    %v822 = vpop.xlane.xlu0 %821
    %v823 = vsel %vm774, %v792, %v757
    %v824 = vsel %vm774, %v794, %v758
    %v825 = vsel %vm774, %v796, %v759
    %v826 = vsel %vm774, %v798, %v760
    %v827 = vsel %vm774, %v800, %v761
    %v828 = vsel %vm774, %v802, %v762
    %v829 = vsel %vm774, %v804, %v763
    %v830 = vsel %vm774, %v806, %v764
    %v831 = vsel %vm774, %v808, %v765
    %v832 = vsel %vm774, %v810, %v766
    %v833 = vsel %vm774, %v812, %v767
    %v834 = vsel %vm774, %v814, %v768
    %v835 = vsel %vm774, %v816, %v769
    %v836 = vsel %vm774, %v818, %v770
    %v837 = vsel %vm774, %v820, %v771
    %v838 = vsel %vm774, %v822, %v772
    %v839 = vsub.f32 %v552, %v823
    %v840 = vsub.f32 %v557, %v824
    %v841 = vsub.f32 %v562, %v825
    %v842 = vsub.f32 %v567, %v826
    %v843 = vsub.f32 %v572, %v827
    %v844 = vsub.f32 %v577, %v828
    %v845 = vsub.f32 %v582, %v829
    %v846 = vsub.f32 %v587, %v830
    %v847 = vsub.f32 %v592, %v831
    %v848 = vsub.f32 %v597, %v832
    %v849 = vsub.f32 %v602, %v833
    %v850 = vsub.f32 %v607, %v834
    %v851 = vsub.f32 %v612, %v835
    %v852 = vsub.f32 %v617, %v836
    %v853 = vsub.f32 %v622, %v837
    %v854 = vsub.f32 %v627, %v838
    %v855 = vmul.f32 %v839, 1.442695
    %v856 = vpow.pop %v855
    %v857 = vmul.f32 %v840, 1.442695
    %v858 = vpow.pop %v857
    %v859 = vmul.f32 %v841, 1.442695
    %v860 = vpow.pop %v859
    %v861 = vmul.f32 %v842, 1.442695
    %v862 = vpow.pop %v861
    %v863 = vmul.f32 %v843, 1.442695
    %v864 = vpow.pop %v863
    %v865 = vmul.f32 %v844, 1.442695
    %v866 = vpow.pop %v865
    %v867 = vmul.f32 %v845, 1.442695
    %v868 = vpow.pop %v867
    %v869 = vmul.f32 %v846, 1.442695
    %v870 = vpow.pop %v869
    %v871 = vmul.f32 %v847, 1.442695
    %v872 = vpow.pop %v871
    %v873 = vmul.f32 %v848, 1.442695
    %v874 = vpow.pop %v873
    %v875 = vmul.f32 %v849, 1.442695
    %v876 = vpow.pop %v875
    %v877 = vmul.f32 %v850, 1.442695
    %v878 = vpow.pop %v877
    %v879 = vmul.f32 %v851, 1.442695
    %v880 = vpow.pop %v879
    %v881 = vmul.f32 %v852, 1.442695
    %v882 = vpow.pop %v881
    %v883 = vmul.f32 %v853, 1.442695
    %v884 = vpow.pop %v883
    %v885 = vmul.f32 %v854, 1.442695
    %v886 = vpow.pop %v885
    %v887 = vsel %vm642, %v856, 0.0
    %v888 = vsel %vm642, %v858, 0.0
    %v889 = vsel %vm642, %v860, 0.0
    %v890 = vsel %vm642, %v862, 0.0
    %v891 = vsel %vm642, %v864, 0.0
    %v892 = vsel %vm642, %v866, 0.0
    %v893 = vsel %vm642, %v868, 0.0
    %v894 = vsel %vm642, %v870, 0.0
    %v895 = vsel %vm642, %v872, 0.0
    %v896 = vsel %vm642, %v874, 0.0
    %v897 = vsel %vm642, %v876, 0.0
    %v898 = vsel %vm642, %v878, 0.0
    %v899 = vsel %vm642, %v880, 0.0
    %v900 = vsel %vm642, %v882, 0.0
    %v901 = vsel %vm642, %v884, 0.0
    %v902 = vsel %vm642, %v886, 0.0
    %903 = vadd.xlane.f32.xlu0 %v887
    %v904 = vpop.xlane.xlu0 %903
    %905 = vadd.xlane.f32.xlu0 %v888
    %v906 = vpop.xlane.xlu0 %905
    %907 = vadd.xlane.f32.xlu0 %v889
    %v908 = vpop.xlane.xlu0 %907
    %909 = vadd.xlane.f32.xlu0 %v890
    %v910 = vpop.xlane.xlu0 %909
    %911 = vadd.xlane.f32.xlu0 %v891
    %v912 = vpop.xlane.xlu0 %911
    %913 = vadd.xlane.f32.xlu0 %v892
    %v914 = vpop.xlane.xlu0 %913
    %915 = vadd.xlane.f32.xlu0 %v893
    %v916 = vpop.xlane.xlu0 %915
    %917 = vadd.xlane.f32.xlu0 %v894
    %v918 = vpop.xlane.xlu0 %917
    %919 = vadd.xlane.f32.xlu0 %v895
    %v920 = vpop.xlane.xlu0 %919
    %921 = vadd.xlane.f32.xlu0 %v896
    %v922 = vpop.xlane.xlu0 %921
    %923 = vadd.xlane.f32.xlu0 %v897
    %v924 = vpop.xlane.xlu0 %923
    %925 = vadd.xlane.f32.xlu0 %v898
    %v926 = vpop.xlane.xlu0 %925
    %927 = vadd.xlane.f32.xlu0 %v899
    %v928 = vpop.xlane.xlu0 %927
    %929 = vadd.xlane.f32.xlu0 %v900
    %v930 = vpop.xlane.xlu0 %929
    %931 = vadd.xlane.f32.xlu0 %v901
    %v932 = vpop.xlane.xlu0 %931
    %933 = vadd.xlane.f32.xlu0 %v902
    %v934 = vpop.xlane.xlu0 %933
    %v935 = vsel %vm642, %v904, 1.0
    %v936 = vsel %vm642, %v906, 1.0
    %v937 = vsel %vm642, %v908, 1.0
    %v938 = vsel %vm642, %v910, 1.0
    %v939 = vsel %vm642, %v912, 1.0
    %v940 = vsel %vm642, %v914, 1.0
    %v941 = vsel %vm642, %v916, 1.0
    %v942 = vsel %vm642, %v918, 1.0
    %v943 = vsel %vm642, %v920, 1.0
    %v944 = vsel %vm642, %v922, 1.0
    %v945 = vsel %vm642, %v924, 1.0
    %v946 = vsel %vm642, %v926, 1.0
    %v947 = vsel %vm642, %v928, 1.0
    %v948 = vsel %vm642, %v930, 1.0
    %v949 = vsel %vm642, %v932, 1.0
    %v950 = vsel %vm642, %v934, 1.0
    %v951 = vsel %vm708, %v856, 0.0
    %v952 = vsel %vm708, %v858, 0.0
    %v953 = vsel %vm708, %v860, 0.0
    %v954 = vsel %vm708, %v862, 0.0
    %v955 = vsel %vm708, %v864, 0.0
    %v956 = vsel %vm708, %v866, 0.0
    %v957 = vsel %vm708, %v868, 0.0
    %v958 = vsel %vm708, %v870, 0.0
    %v959 = vsel %vm708, %v872, 0.0
    %v960 = vsel %vm708, %v874, 0.0
    %v961 = vsel %vm708, %v876, 0.0
    %v962 = vsel %vm708, %v878, 0.0
    %v963 = vsel %vm708, %v880, 0.0
    %v964 = vsel %vm708, %v882, 0.0
    %v965 = vsel %vm708, %v884, 0.0
    %v966 = vsel %vm708, %v886, 0.0
    %967 = vadd.xlane.f32.xlu0 %v951
    %v968 = vpop.xlane.xlu0 %967
    %969 = vadd.xlane.f32.xlu0 %v952
    %v970 = vpop.xlane.xlu0 %969
    %971 = vadd.xlane.f32.xlu0 %v953
    %v972 = vpop.xlane.xlu0 %971
    %973 = vadd.xlane.f32.xlu0 %v954
    %v974 = vpop.xlane.xlu0 %973
    %975 = vadd.xlane.f32.xlu0 %v955
    %v976 = vpop.xlane.xlu0 %975
    %977 = vadd.xlane.f32.xlu0 %v956
    %v978 = vpop.xlane.xlu0 %977
    %979 = vadd.xlane.f32.xlu0 %v957
    %v980 = vpop.xlane.xlu0 %979
    %981 = vadd.xlane.f32.xlu0 %v958
    %v982 = vpop.xlane.xlu0 %981
    %983 = vadd.xlane.f32.xlu0 %v959
    %v984 = vpop.xlane.xlu0 %983
    %985 = vadd.xlane.f32.xlu0 %v960
    %v986 = vpop.xlane.xlu0 %985
    %987 = vadd.xlane.f32.xlu0 %v961
    %v988 = vpop.xlane.xlu0 %987
    %989 = vadd.xlane.f32.xlu0 %v962
    %v990 = vpop.xlane.xlu0 %989
    %991 = vadd.xlane.f32.xlu0 %v963
    %v992 = vpop.xlane.xlu0 %991
    %993 = vadd.xlane.f32.xlu0 %v964
    %v994 = vpop.xlane.xlu0 %993
    %995 = vadd.xlane.f32.xlu0 %v965
    %v996 = vpop.xlane.xlu0 %995
    %997 = vadd.xlane.f32.xlu0 %v966
    %v998 = vpop.xlane.xlu0 %997
    %v999 = vsel %vm708, %v968, %v935
    %v1000 = vsel %vm708, %v970, %v936
    %v1001 = vsel %vm708, %v972, %v937
    %v1002 = vsel %vm708, %v974, %v938
    %v1003 = vsel %vm708, %v976, %v939
    %v1004 = vsel %vm708, %v978, %v940
    %v1005 = vsel %vm708, %v980, %v941
    %v1006 = vsel %vm708, %v982, %v942
    %v1007 = vsel %vm708, %v984, %v943
    %v1008 = vsel %vm708, %v986, %v944
    %v1009 = vsel %vm708, %v988, %v945
    %v1010 = vsel %vm708, %v990, %v946
    %v1011 = vsel %vm708, %v992, %v947
    %v1012 = vsel %vm708, %v994, %v948
    %v1013 = vsel %vm708, %v996, %v949
    %v1014 = vsel %vm708, %v998, %v950
    %v1015 = vsel %vm774, %v856, 0.0
    %v1016 = vsel %vm774, %v858, 0.0
    %v1017 = vsel %vm774, %v860, 0.0
    %v1018 = vsel %vm774, %v862, 0.0
    %v1019 = vsel %vm774, %v864, 0.0
    %v1020 = vsel %vm774, %v866, 0.0
    %v1021 = vsel %vm774, %v868, 0.0
    %v1022 = vsel %vm774, %v870, 0.0
    %v1023 = vsel %vm774, %v872, 0.0
    %v1024 = vsel %vm774, %v874, 0.0
    %v1025 = vsel %vm774, %v876, 0.0
    %v1026 = vsel %vm774, %v878, 0.0
    %v1027 = vsel %vm774, %v880, 0.0
    %v1028 = vsel %vm774, %v882, 0.0
    %v1029 = vsel %vm774, %v884, 0.0
    %v1030 = vsel %vm774, %v886, 0.0
    %1031 = vadd.xlane.f32.xlu0 %v1015
    %v1032 = vpop.xlane.xlu0 %1031
    %1033 = vadd.xlane.f32.xlu0 %v1016
    %v1034 = vpop.xlane.xlu0 %1033
    %1035 = vadd.xlane.f32.xlu0 %v1017
    %v1036 = vpop.xlane.xlu0 %1035
    %1037 = vadd.xlane.f32.xlu0 %v1018
    %v1038 = vpop.xlane.xlu0 %1037
    %1039 = vadd.xlane.f32.xlu0 %v1019
    %v1040 = vpop.xlane.xlu0 %1039
    %1041 = vadd.xlane.f32.xlu0 %v1020
    %v1042 = vpop.xlane.xlu0 %1041
    %1043 = vadd.xlane.f32.xlu0 %v1021
    %v1044 = vpop.xlane.xlu0 %1043
    %1045 = vadd.xlane.f32.xlu0 %v1022
    %v1046 = vpop.xlane.xlu0 %1045
    %1047 = vadd.xlane.f32.xlu0 %v1023
    %v1048 = vpop.xlane.xlu0 %1047
    %1049 = vadd.xlane.f32.xlu0 %v1024
    %v1050 = vpop.xlane.xlu0 %1049
    %1051 = vadd.xlane.f32.xlu0 %v1025
    %v1052 = vpop.xlane.xlu0 %1051
    %1053 = vadd.xlane.f32.xlu0 %v1026
    %v1054 = vpop.xlane.xlu0 %1053
    %1055 = vadd.xlane.f32.xlu0 %v1027
    %v1056 = vpop.xlane.xlu0 %1055
    %1057 = vadd.xlane.f32.xlu0 %v1028
    %v1058 = vpop.xlane.xlu0 %1057
    %1059 = vadd.xlane.f32.xlu0 %v1029
    %v1060 = vpop.xlane.xlu0 %1059
    %1061 = vadd.xlane.f32.xlu0 %v1030
    %v1062 = vpop.xlane.xlu0 %1061
    %v1063 = vsel %vm774, %v1032, %v999
    %v1064 = vsel %vm774, %v1034, %v1000
    %v1065 = vsel %vm774, %v1036, %v1001
    %v1066 = vsel %vm774, %v1038, %v1002
    %v1067 = vsel %vm774, %v1040, %v1003
    %v1068 = vsel %vm774, %v1042, %v1004
    %v1069 = vsel %vm774, %v1044, %v1005
    %v1070 = vsel %vm774, %v1046, %v1006
    %v1071 = vsel %vm774, %v1048, %v1007
    %v1072 = vsel %vm774, %v1050, %v1008
    %v1073 = vsel %vm774, %v1052, %v1009
    %v1074 = vsel %vm774, %v1054, %v1010
    %v1075 = vsel %vm774, %v1056, %v1011
    %v1076 = vsel %vm774, %v1058, %v1012
    %v1077 = vsel %vm774, %v1060, %v1013
    %v1078 = vsel %vm774, %v1062, %v1014
    %v1079 = vrcp.pop %v1063
    %v1080 = vmul.f32 %v856, %v1079
    %v1081 = vrcp.pop %v1064
    %v1082 = vmul.f32 %v858, %v1081
    %v1083 = vrcp.pop %v1065
    %v1084 = vmul.f32 %v860, %v1083
    %v1085 = vrcp.pop %v1066
    %v1086 = vmul.f32 %v862, %v1085
    %v1087 = vrcp.pop %v1067
    %v1088 = vmul.f32 %v864, %v1087
    %v1089 = vrcp.pop %v1068
    %v1090 = vmul.f32 %v866, %v1089
    %v1091 = vrcp.pop %v1069
    %v1092 = vmul.f32 %v868, %v1091
    %v1093 = vrcp.pop %v1070
    %v1094 = vmul.f32 %v870, %v1093
    %v1095 = vrcp.pop %v1071
    %v1096 = vmul.f32 %v872, %v1095
    %v1097 = vrcp.pop %v1072
    %v1098 = vmul.f32 %v874, %v1097
    %v1099 = vrcp.pop %v1073
    %v1100 = vmul.f32 %v876, %v1099
    %v1101 = vrcp.pop %v1074
    %v1102 = vmul.f32 %v878, %v1101
    %v1103 = vrcp.pop %v1075
    %v1104 = vmul.f32 %v880, %v1103
    %v1105 = vrcp.pop %v1076
    %v1106 = vmul.f32 %v882, %v1105
    %v1107 = vrcp.pop %v1077
    %v1108 = vmul.f32 %v884, %v1107
    %v1109 = vrcp.pop %v1078
    %v1110 = vmul.f32 %v886, %v1109
    %1111 = vst [vmem:[#allocation5] sm:$0xff] %v1080
    %1112 = vst [vmem:[#allocation5 + $0x8] sm:$0xff] %v1082
    %1113 = vst [vmem:[#allocation5 + $0x10] sm:$0xff] %v1084
    %1114 = vst [vmem:[#allocation5 + $0x18] sm:$0xff] %v1086
    %1115 = vst [vmem:[#allocation5 + $0x20] sm:$0xff] %v1088
    %1116 = vst [vmem:[#allocation5 + $0x28] sm:$0xff] %v1090
    %1117 = vst [vmem:[#allocation5 + $0x30] sm:$0xff] %v1092
    %1118 = vst [vmem:[#allocation5 + $0x38] sm:$0xff] %v1094
    %1119 = vst [vmem:[#allocation5 + $0x40] sm:$0xff] %v1096
    %1120 = vst [vmem:[#allocation5 + $0x48] sm:$0xff] %v1098
    %1121 = vst [vmem:[#allocation5 + $0x50] sm:$0xff] %v1100
    %1122 = vst [vmem:[#allocation5 + $0x58] sm:$0xff] %v1102
    %1123 = vst [vmem:[#allocation5 + $0x60] sm:$0xff] %v1104
    %1124 = vst [vmem:[#allocation5 + $0x68] sm:$0xff] %v1106
    %1125 = vst [vmem:[#allocation5 + $0x70] sm:$0xff] %v1108
    %1126 = vst [vmem:[#allocation5 + $0x78] sm:$0xff] %v1110
    // Predicated region
    $region34: #{tpu_custom_call.1} parent=1 // pred_check
      _
    $region35: #{tpu_custom_call.1} parent=1 // pred_check_branch
      %1128 = sbr.rel (0) target = $region37
    $region36: #{tpu_custom_call.1} parent=1 // pred_region
      %s1130 = ssub.s32 2048, 2048
      %1131 = vsyncadd [#allocation4], %s1130
      %s1132 = sshll.u32 [#allocation5], 4
      %s1133 = int_to_ptr.vmem [resolvable:$true] %s1132
      %1138 = dma.vmem_to_hbm [thread:$0]  %s1133, 2048, %s7, [#allocation4], 128, 128, 8
    $region37: #{tpu_custom_call.1} parent=1 // pred_fallthru
      _
    // Predicated region
    $region38: #{tpu_custom_call.1} parent=1 // pred_check
      _
    $region39: #{tpu_custom_call.1} parent=1 // pred_check_branch
      %1140 = sbr.rel (0) target = $region41
    $region40: #{tpu_custom_call.1} parent=1 // pred_region
      %1141 = dma.done [#allocation4], 2048
    $region41: #{tpu_custom_call.1} parent=1 // pred_fallthru
      _
    %1142 = vsyncpa [#allocation3], 1
    %1143 = vsyncpa [#allocation4], 1

</llo_original>
